<compile_context>
chip_gen: v5e
topology: v5e:2x2
jax: 0.10.0
libtpu: 0.0.40
codegen_flags: <defaults>
</compile_context>

<pallas_src>
import functools

import jax
import jax.numpy as jnp
from jax import lax
from jax.experimental import pallas as pl
from jax.experimental.pallas import tpu as pltpu

_LANES = 128
_SUBLANES = 8
_MAX_TILE_ROWS = 2048   # 2048 x 128 f32 = 1 MiB per input block
_N_SPLIT = 2            # leading "parallel" grid axis (2 TCs on v7x)
_EPS = 0.0001


def _fold_to_sublane_tile(x, tile_rows):
    """Tree-fold a (tile_rows, 128) value down to one (8, 128) tile (VPU adds)."""
    parts = [x[r:r + _SUBLANES, :] for r in range(0, tile_rows, _SUBLANES)]
    while len(parts) > 1:
        nxt = []
        for j in range(0, len(parts) - 1, 2):
            nxt.append(parts[j] + parts[j + 1])
        if len(parts) % 2:
            nxt.append(parts[-1])
        parts = nxt
    return parts[0]


def _rrmse_kernel(o_ref, l_ref, out_ref, *, rows, tile_rows, nb_per_split):
    c = pl.program_id(0)          # core-parallel split index
    i = pl.program_id(1)          # sequential block index within the split

    @pl.when(i == 0)
    def _init():
        out_ref[...] = jnp.zeros_like(out_ref)

    block_row0 = (c * nb_per_split + i) * tile_rows
    valid_rows = rows - block_row0

    def _block_error():
        # In-kernel dtype cast: only the original bytes stream from HBM.
        o = o_ref[...].astype(jnp.float32)
        l = l_ref[...].astype(jnp.float32)
        return jnp.abs(o - l) / (l + _EPS)

    # Fast path (vast majority of blocks): fully in-bounds, no row mask.
    @pl.when(valid_rows >= tile_rows)
    def _full_block():
        out_ref[...] += _fold_to_sublane_tile(_block_error(), tile_rows)

    # Ragged tail block (at most one real one per call): mask rows past the
    # array end.  jnp.where is a select, so garbage/NaN in out-of-bounds rows
    # never propagates into the sum.  Fully out-of-range overshoot blocks of
    # the second split (valid_rows <= 0) skip both branches entirely.
    @pl.when(jnp.logical_and(valid_rows > 0, valid_rows < tile_rows))
    def _tail_block():
        row_ids = lax.broadcasted_iota(jnp.int32, (tile_rows, _LANES), 0)
        err = jnp.where(row_ids < valid_rows, _block_error(), 0.0)
        out_ref[...] += _fold_to_sublane_tile(err, tile_rows)


def loss_train(outputs, label):
    """Pallas equivalent of Loss_train.forward; returns a scalar float32."""
    assert outputs.shape == label.shape
    n = outputs.size
    assert n > 0

    flat_o = outputs.reshape(-1)
    flat_l = label.reshape(-1)

    # Pad so the flat array is a lane-dense (rows, 128) slab.  For small
    # arrays we additionally round rows up to a multiple of 8 so every block
    # is (8,128)-aligned.  Pad value 1 for both tensors contributes exactly 0
    # error; the true element count n is used for the final mean.
    lane_pad = (-n) % _LANES
    rows_unpadded = (n + lane_pad) // _LANES
    if rows_unpadded < _MAX_TILE_ROWS:
        rows = ((rows_unpadded + _SUBLANES - 1) // _SUBLANES) * _SUBLANES
    else:
        rows = rows_unpadded
    total_pad = rows * _LANES - n
    if total_pad:
        flat_o = jnp.pad(flat_o, (0, total_pad), constant_values=1)
        flat_l = jnp.pad(flat_l, (0, total_pad), constant_values=1)

    o2d = flat_o.reshape(rows, _LANES)
    l2d = flat_l.reshape(rows, _LANES)

    # Largest lane-dense block that comfortably fits VMEM on every generation
    # (2 inputs x 2 pipeline buffers x 1 MiB << default scoped VMEM).
    tile_rows = min(_MAX_TILE_ROWS, rows)       # always a multiple of 8

    total_blocks = pl.cdiv(rows, tile_rows)
    n_split = _N_SPLIT if total_blocks >= _N_SPLIT else 1
    nb_per_split = pl.cdiv(total_blocks, n_split)

    def in_index(c, i):
        # Clamp so every DMA'd block origin stays in bounds; (c, i) pairs that
        # run past the array are skipped by the in-kernel valid_rows check.
        return (jnp.minimum(c * nb_per_split + i, total_blocks - 1), 0)

    kernel = functools.partial(
        _rrmse_kernel, rows=rows, tile_rows=tile_rows, nb_per_split=nb_per_split
    )

    partials = pl.pallas_call(
        kernel,
        out_shape=jax.ShapeDtypeStruct((n_split * _SUBLANES, _LANES), jnp.float32),
        grid=(n_split, nb_per_split),
        in_specs=[
            pl.BlockSpec((tile_rows, _LANES), in_index),
            pl.BlockSpec((tile_rows, _LANES), in_index),
        ],
        out_specs=pl.BlockSpec((_SUBLANES, _LANES), lambda c, i: (c, 0)),
        compiler_params=pltpu.CompilerParams(
            dimension_semantics=("parallel", "arbitrary"),
        ),
    )(o2d, l2d)

    # Final scalar reduce + exact divide happen once, outside the kernel.
    return jnp.sum(partials) / jnp.float32(n)


def _reference(outputs, label):
    error = jnp.abs(outputs - label) / (label + _EPS)
    return jnp.mean(error.reshape(-1))


if __name__ == "__main__":
    key = jax.random.PRNGKey(0)
    k1, k2, k3, k4 = jax.random.split(key, 4)

    # Primary case: small NCHW shape consistent with the spectral-SR loss.
    shape = (2, 4, 16, 16)
    label = jax.random.uniform(k1, shape, dtype=jnp.float32, minval=0.1, maxval=1.0)
    outputs = label + 0.05 * jax.random.normal(k2, shape, dtype=jnp.float32)

    result = loss_train(outputs, label)
    jax.block_until_ready(result)
    ref = _reference(outputs, label)
    assert jnp.allclose(result, ref, rtol=1e-5, atol=1e-6), (result, ref)

    # Ragged case (element count not a multiple of 128) exercises the padding
    # path and the sub-8-row rounding.
    shape2 = (3, 4, 10, 10)
    label2 = jax.random.uniform(k3, shape2, dtype=jnp.float32, minval=0.1, maxval=1.0)
    outputs2 = label2 + 0.05 * jax.random.normal(k4, shape2, dtype=jnp.float32)

    result2 = loss_train(outputs2, label2)
    jax.block_until_ready(result2)
    ref2 = _reference(outputs2, label2)
    assert jnp.allclose(result2, ref2, rtol=1e-5, atol=1e-6), (result2, ref2)

    print("KERNEL_OK")
</pallas_src>

<mosaic_0001>
module attributes {stable_mosaic.version = 11 : i64} {
  func.func @_rrmse_kernel(%arg0: i32, %arg1: i32, %arg2: memref<16x128xf32, #tpu.memory_space<vmem>>, %arg3: memref<16x128xf32, #tpu.memory_space<vmem>>, %arg4: memref<8x128xf32, #tpu.memory_space<vmem>>) attributes {dimension_semantics = [#tpu.dimension_semantics<parallel>, #tpu.dimension_semantics<arbitrary>], iteration_bounds = array<i64: 1, 1>, scalar_prefetch = 0 : i64, scratch_operands = 0 : i64, tpu.core_type = #tpu.core_type<tc>, window_params = [{transform_indices = @transform_0, window_bounds = array<i64: 16, 128>}, {transform_indices = @transform_1, window_bounds = array<i64: 16, 128>}, {transform_indices = @transform_2, window_bounds = array<i64: 8, 128>}]} {
    %c0_i32 = arith.constant 0 : i32
    %0 = arith.cmpi eq, %arg1, %c0_i32 : i32
    %1 = arith.extui %0 : i1 to i32
    %c0_i32_0 = arith.constant 0 : i32
    %2 = arith.cmpi ne, %1, %c0_i32_0 : i32
    scf.if %2 {
      %cst = arith.constant 0.000000e+00 : f32
      %15 = vector.broadcast %cst : f32 to vector<8x128xf32>
      %c0 = arith.constant 0 : index
      %c0_7 = arith.constant 0 : index
      %16 = vector.load %arg4[%c0, %c0_7] : memref<8x128xf32, #tpu.memory_space<vmem>>, vector<8x128xf32>
      tpu.vector_store %arg4[%c0, %c0_7], %15 {strides = array<i32>} : memref<8x128xf32, #tpu.memory_space<vmem>>, vector<8x128xf32>,
    } else {
    }
    %c1_i32 = arith.constant 1 : i32
    %3 = arith.muli %arg0, %c1_i32 : i32
    %4 = arith.addi %3, %arg1 : i32
    %c16_i32 = arith.constant 16 : i32
    %5 = arith.muli %4, %c16_i32 : i32
    %c16_i32_1 = arith.constant 16 : i32
    %6 = arith.subi %c16_i32_1, %5 : i32
    %c16_i32_2 = arith.constant 16 : i32
    %7 = arith.cmpi sge, %6, %c16_i32_2 : i32
    %8 = arith.extui %7 : i1 to i32
    %c0_i32_3 = arith.constant 0 : i32
    %9 = arith.cmpi ne, %8, %c0_i32_3 : i32
    scf.if %9 {
      %c0 = arith.constant 0 : index
      %c0_7 = arith.constant 0 : index
      %15 = vector.load %arg4[%c0, %c0_7] : memref<8x128xf32, #tpu.memory_space<vmem>>, vector<8x128xf32>
      %c0_8 = arith.constant 0 : index
      %c0_9 = arith.constant 0 : index
      %16 = vector.load %arg2[%c0_8, %c0_9] : memref<16x128xf32, #tpu.memory_space<vmem>>, vector<16x128xf32>
      %c0_10 = arith.constant 0 : index
      %c0_11 = arith.constant 0 : index
      %17 = vector.load %arg3[%c0_10, %c0_11] : memref<16x128xf32, #tpu.memory_space<vmem>>, vector<16x128xf32>
      %18 = arith.subf %16, %17 : vector<16x128xf32>
      %19 = math.absf %18 : vector<16x128xf32>
      %cst = arith.constant 9.99999974E-5 : f32
      %20 = vector.broadcast %cst : f32 to vector<16x128xf32>
      %21 = arith.addf %17, %20 : vector<16x128xf32>
      %22 = arith.divf %19, %21 : vector<16x128xf32>
      %23 = vector.extract_strided_slice %22 {offsets = [0, 0], sizes = [8, 128], strides = [1, 1]} : vector<16x128xf32> to vector<8x128xf32>
      %24 = vector.extract_strided_slice %22 {offsets = [8, 0], sizes = [8, 128], strides = [1, 1]} : vector<16x128xf32> to vector<8x128xf32>
      %25 = arith.addf %23, %24 : vector<8x128xf32>
      %26 = arith.addf %15, %25 : vector<8x128xf32>
      %c0_12 = arith.constant 0 : index
      %c0_13 = arith.constant 0 : index
      %27 = vector.load %arg4[%c0_12, %c0_13] : memref<8x128xf32, #tpu.memory_space<vmem>>, vector<8x128xf32>
      tpu.vector_store %arg4[%c0_12, %c0_13], %26 {strides = array<i32>} : memref<8x128xf32, #tpu.memory_space<vmem>>, vector<8x128xf32>,
    } else {
    }
    %c0_i32_4 = arith.constant 0 : i32
    %10 = arith.cmpi sgt, %6, %c0_i32_4 : i32
    %c16_i32_5 = arith.constant 16 : i32
    %11 = arith.cmpi slt, %6, %c16_i32_5 : i32
    %12 = arith.andi %10, %11 : i1
    %13 = arith.extui %12 : i1 to i32
    %c0_i32_6 = arith.constant 0 : i32
    %14 = arith.cmpi ne, %13, %c0_i32_6 : i32
    scf.if %14 {
      %15 = tpu.iota {dimensions = array<i32: 0>} : vector<16x128xi32>
      %16 = vector.broadcast %6 : i32 to vector<16x128xi32>
      %17 = arith.cmpi slt, %15, %16 : vector<16x128xi32>
      %c0 = arith.constant 0 : index
      %c0_7 = arith.constant 0 : index
      %18 = vector.load %arg2[%c0, %c0_7] : memref<16x128xf32, #tpu.memory_space<vmem>>, vector<16x128xf32>
      %c0_8 = arith.constant 0 : index
      %c0_9 = arith.constant 0 : index
      %19 = vector.load %arg3[%c0_8, %c0_9] : memref<16x128xf32, #tpu.memory_space<vmem>>, vector<16x128xf32>
      %20 = arith.subf %18, %19 : vector<16x128xf32>
      %21 = math.absf %20 : vector<16x128xf32>
      %cst = arith.constant 9.99999974E-5 : f32
      %22 = vector.broadcast %cst : f32 to vector<16x128xf32>
      %23 = arith.addf %19, %22 : vector<16x128xf32>
      %24 = arith.divf %21, %23 : vector<16x128xf32>
      %cst_10 = arith.constant 0.000000e+00 : f32
      %25 = vector.broadcast %cst_10 : f32 to vector<16x128xf32>
      %26 = arith.select %17, %24, %25 : vector<16x128xi1>, vector<16x128xf32>
      %c0_11 = arith.constant 0 : index
      %c0_12 = arith.constant 0 : index
      %27 = vector.load %arg4[%c0_11, %c0_12] : memref<8x128xf32, #tpu.memory_space<vmem>>, vector<8x128xf32>
      %28 = vector.extract_strided_slice %26 {offsets = [0, 0], sizes = [8, 128], strides = [1, 1]} : vector<16x128xf32> to vector<8x128xf32>
      %29 = vector.extract_strided_slice %26 {offsets = [8, 0], sizes = [8, 128], strides = [1, 1]} : vector<16x128xf32> to vector<8x128xf32>
      %30 = arith.addf %28, %29 : vector<8x128xf32>
      %31 = arith.addf %27, %30 : vector<8x128xf32>
      %c0_13 = arith.constant 0 : index
      %c0_14 = arith.constant 0 : index
      %32 = vector.load %arg4[%c0_13, %c0_14] : memref<8x128xf32, #tpu.memory_space<vmem>>, vector<8x128xf32>
      tpu.vector_store %arg4[%c0_13, %c0_14], %31 {strides = array<i32>} : memref<8x128xf32, #tpu.memory_space<vmem>>, vector<8x128xf32>,
    } else {
    }
    return
  }
  func.func @transform_0(%arg0: i32, %arg1: i32) -> (i32, i32) {
    %c1_i32 = arith.constant 1 : i32
    %0 = arith.muli %arg0, %c1_i32 : i32
    %1 = arith.addi %0, %arg1 : i32
    %c0_i32 = arith.constant 0 : i32
    %2 = arith.minsi %1, %c0_i32 : i32
    %c0_i32_0 = arith.constant 0 : i32
    %c0_i32_1 = arith.constant 0 : i32
    return %2, %c0_i32_0 : i32, i32
  }
  func.func @transform_1(%arg0: i32, %arg1: i32) -> (i32, i32) {
    %c1_i32 = arith.constant 1 : i32
    %0 = arith.muli %arg0, %c1_i32 : i32
    %1 = arith.addi %0, %arg1 : i32
    %c0_i32 = arith.constant 0 : i32
    %2 = arith.minsi %1, %c0_i32 : i32
    %c0_i32_0 = arith.constant 0 : i32
    %c0_i32_1 = arith.constant 0 : i32
    return %2, %c0_i32_0 : i32, i32
  }
  func.func @transform_2(%arg0: i32, %arg1: i32) -> (i32, i32) {
    %c0_i32 = arith.constant 0 : i32
    %c0_i32_0 = arith.constant 0 : i32
    return %arg0, %c0_i32 : i32, i32
  }
}

</mosaic_0001>

<llo_original>
// kernel: tpu_custom_call.1
$region0: #{tpu_custom_call.1}
  #allocation0 [shape = 'u32[]', space=smem, size = 0x4, offset = 0x4, fixed_abs, tag = 'smem constant byte address 0x4 - core index']
  #allocation1 [shape = 'u32[72,128]{1,0:T(1,128)}', space=vmem, size = 0x9000, scoped, tag = 'internal scratch']
  %s0 = inlined_call_operand.hbm [shape: f32[16,128], index: 0, kind: input, shape index: {}]
  %s1 = inlined_call_operand.hbm [shape: f32[16,128], index: 1, kind: input, shape index: {}]
  %s2 = inlined_call_operand.hbm [shape: f32[8,128], index: 2, kind: output, shape index: {}]
  %s3 = sld [smem:[#allocation0]]
  $region38: #{tpu_custom_call.1} parent=0
    _
  %s5 = ssub.s32 1, %s3
  %s6 = scalar_select 0, %s5, %s3
  $region1: #{tpu_custom_call.1} parent=0
    #allocation2 [shape = 'u8[8192]{0}', space=vmem, size = 0x2000, scoped, tag = 'input window, operand 0, single buffered']
    #allocation3 [shape = 's32[1]{0}', space=sflag, size = 0x4, scoped, tag = 'scoped memory for tpu_custom_call.1']
    #allocation4 [shape = 's32[1]{0}', space=sflag, size = 0x4, scoped, tag = 'scoped memory for tpu_custom_call.1']
    #allocation5 [shape = 'u8[8192]{0}', space=vmem, size = 0x2000, scoped, tag = 'input window, operand 1, single buffered']
    #allocation6 [shape = 's32[1]{0}', space=sflag, size = 0x4, scoped, tag = 'scoped memory for tpu_custom_call.1']
    #allocation7 [shape = 'u8[4096]{0}', space=vmem, size = 0x1000, scoped, tag = 'output window, operand 0, single buffered']
    %7 = vsyncpa [#allocation3], 0
    %8 = vsyncpa [#allocation6], 0
    %9 = vsyncpa [#allocation4], 0
    // Predicated region
    $region2: #{tpu_custom_call.1} parent=1 // pred_check
      _
    $region3: #{tpu_custom_call.1} parent=1 // pred_check_branch
      %11 = sbr.rel (0) target = $region5
    $region4: #{tpu_custom_call.1} parent=1 // pred_region
      %s12 = sadd.s32 0, 0
      %p13 = scmp.lt.s32.totalorder %s12, 0
      %s14 = scalar_select %p13, %s12, 0
      %s15 = smul.u32 2, %s14
      %17 = vsyncadd [#allocation3], 0
      %s18 = smul.addr %s15, 8
      %s19 = scalar_lea.hbm %s0, %s18
      %s20 = sshll.u32 %s19, 4
      %s21 = int_to_ptr.hbm [resolvable:$true] %s20
      %s22 = sshll.u32 [#allocation2], 4
      %s23 = int_to_ptr.vmem [resolvable:$true] %s22
      %28 = dma.hbm_to_vmem [thread:$0]  %s21, 256, %s23, [#allocation3], 128, 128, 8
    $region5: #{tpu_custom_call.1} parent=1 // pred_fallthru
      _
    // Predicated region
    $region6: #{tpu_custom_call.1} parent=1 // pred_check
      _
    $region7: #{tpu_custom_call.1} parent=1 // pred_check_branch
      %30 = sbr.rel (0) target = $region9
    $region8: #{tpu_custom_call.1} parent=1 // pred_region
      %s31 = sadd.s32 0, 0
      %p32 = scmp.lt.s32.totalorder %s31, 0
      %s33 = scalar_select %p32, %s31, 0
      %s34 = smul.u32 2, %s33
      %36 = vsyncadd [#allocation6], 0
      %s37 = smul.addr %s34, 8
      %s38 = scalar_lea.hbm %s1, %s37
      %s39 = sshll.u32 %s38, 4
      %s40 = int_to_ptr.hbm [resolvable:$true] %s39
      %s41 = sshll.u32 [#allocation5], 4
      %s42 = int_to_ptr.vmem [resolvable:$true] %s41
      %47 = dma.hbm_to_vmem [thread:$0]  %s40, 256, %s42, [#allocation6], 128, 128, 8
    $region9: #{tpu_custom_call.1} parent=1 // pred_fallthru
      _
    // Predicated region
    $region10: #{tpu_custom_call.1} parent=1 // pred_check
      _
    $region11: #{tpu_custom_call.1} parent=1 // pred_check_branch
      %49 = sbr.rel (0) target = $region13
    $region12: #{tpu_custom_call.1} parent=1 // pred_region
      %51 = dma.done [#allocation3], 256
    $region13: #{tpu_custom_call.1} parent=1 // pred_fallthru
      _
    // Predicated region
    $region14: #{tpu_custom_call.1} parent=1 // pred_check
      _
    $region15: #{tpu_custom_call.1} parent=1 // pred_check_branch
      %53 = sbr.rel (0) target = $region17
    $region16: #{tpu_custom_call.1} parent=1 // pred_region
      %55 = dma.done [#allocation6], 256
    $region17: #{tpu_custom_call.1} parent=1 // pred_fallthru
      _
    %s56 = sadd.s32 0, 0
    %p57 = scmp.lt.s32.totalorder %s56, 0
    %s58 = scalar_select %p57, %s56, 0
    %s59 = smul.u32 2, %s58
    %s60 = sadd.s32 0, 0
    %p61 = scmp.lt.s32.totalorder %s60, 0
    %s62 = scalar_select %p61, %s60, 0
    %s63 = smul.u32 2, %s62
    %p64 = scmp.eq.s32.totalorder 0, 0
    // Predicated region
    $region18: #{tpu_custom_call.1} parent=1 // pred_check
      %p65 = pneg %p64
    $region19: #{tpu_custom_call.1} parent=1 // pred_check_branch
      %67 = sbr.rel (%p65) target = $region21
    $region20: #{tpu_custom_call.1} parent=1 // pred_region
      %68 = vst [vmem:[#allocation7] sm:$0xff] 0.0
    $region21: #{tpu_custom_call.1} parent=1 // pred_fallthru
      _
    %s69 = sadd.s32 0, 0
    %s70 = smul.u32 %s69, 16
    %s71 = ssub.s32 16, %s70
    %p72 = scmp.ge.s32.totalorder %s71, 16
    // Predicated region
    $region22: #{tpu_custom_call.1} parent=1 // pred_check
      %p73 = pneg %p72
    $region23: #{tpu_custom_call.1} parent=1 // pred_check_branch
      %75 = sbr.rel (%p73) target = $region25
    $region24: #{tpu_custom_call.1} parent=1 // pred_region
      %v76 = vld [vmem:[#allocation7] sm:$0xff]
      %v77 = vld [vmem:[#allocation2] sm:$0xff]
      %v78 = vld [vmem:[#allocation2 + $0x8] sm:$0xff]
      %v79 = vld [vmem:[#allocation5] sm:$0xff]
      %v80 = vld [vmem:[#allocation5 + $0x8] sm:$0xff]
      %v81 = vsub.f32 %v77, %v79
      %v82 = vsub.f32 %v78, %v80
      %v83 = vand.u32 2147483647, %v81
      %v84 = vand.u32 2147483647, %v82
      %v85 = vadd.f32 %v79, 0.0001
      %v86 = vadd.f32 %v80, 0.0001
      %v87 = vrcp.pop %v85
      %v88 = vmul.f32 %v85, %v87
      %v89 = vsub.f32 1.0, %v88
      %v90 = vmul.f32 %v87, %v89
      %v91 = vadd.f32 %v87, %v90
      %vm92 = vweird.f32 %v85
      %vm93 = vweird.f32 %v87
      %vm94 = vmor %vm92, %vm93
      %v95 = vsel %vm94, %v87, %v91
      %v96 = vand.u32 2147483647, %v85
      %vm97 = vcmp.eq.f32.partialorder %v96, 8.507059e+37
      %v98 = vand.u32 %v85, 2147483648
      %v99 = vor.u32 1.1754944e-38, %v98
      %v100 = vsel %vm97, %v99, %v95
      %v101 = vmul.f32 %v83, %v100
      %v102 = vrcp.pop %v86
      %v103 = vmul.f32 %v86, %v102
      %v104 = vsub.f32 1.0, %v103
      %v105 = vmul.f32 %v102, %v104
      %v106 = vadd.f32 %v102, %v105
      %vm107 = vweird.f32 %v86
      %vm108 = vweird.f32 %v102
      %vm109 = vmor %vm107, %vm108
      %v110 = vsel %vm109, %v102, %v106
      %v111 = vand.u32 2147483647, %v86
      %vm112 = vcmp.eq.f32.partialorder %v111, 8.507059e+37
      %v113 = vand.u32 %v86, 2147483648
      %v114 = vor.u32 1.1754944e-38, %v113
      %v115 = vsel %vm112, %v114, %v110
      %v116 = vmul.f32 %v84, %v115
      %v117 = vadd.f32 %v101, %v116
      %v118 = vadd.f32 %v76, %v117
      %119 = vst [vmem:[#allocation7] sm:$0xff] %v118
    $region25: #{tpu_custom_call.1} parent=1 // pred_fallthru
      _
    %p120 = scmp.gt.s32.totalorder %s71, 0
    %p121 = scmp.lt.s32.totalorder %s71, 16
    %p122 = pnand %p120, %p121
    %p123 = pneg %p122
    // Predicated region
    $region26: #{tpu_custom_call.1} parent=1 // pred_check
      _
    $region27: #{tpu_custom_call.1} parent=1 // pred_check_branch
      %125 = sbr.rel (%p122) target = $region29
    $region28: #{tpu_custom_call.1} parent=1 // pred_region
      %v126 = vlaneseq
      %v127 = vshrl.u32 %v126, 7
      %v128 = vadd.s32 %v127, 8
      %v129 = vstv %s71
      %vm130 = vcmp.lt.s32.totalorder %v127, %v129
      %vm131 = vcmp.lt.s32.totalorder %v128, %v129
      %v132 = vld [vmem:[#allocation2] sm:$0xff]
      %v133 = vld [vmem:[#allocation2 + $0x8] sm:$0xff]
      %v134 = vld [vmem:[#allocation5] sm:$0xff]
      %v135 = vld [vmem:[#allocation5 + $0x8] sm:$0xff]
      %v136 = vsub.f32 %v132, %v134
      %v137 = vsub.f32 %v133, %v135
      %v138 = vand.u32 2147483647, %v136
      %v139 = vand.u32 2147483647, %v137
      %v140 = vadd.f32 %v134, 0.0001
      %v141 = vadd.f32 %v135, 0.0001
      %v142 = vrcp.pop %v140
      %v143 = vmul.f32 %v140, %v142
      %v144 = vsub.f32 1.0, %v143
      %v145 = vmul.f32 %v142, %v144
      %v146 = vadd.f32 %v142, %v145
      %vm147 = vweird.f32 %v140
      %vm148 = vweird.f32 %v142
      %vm149 = vmor %vm147, %vm148
      %v150 = vsel %vm149, %v142, %v146
      %v151 = vand.u32 2147483647, %v140
      %vm152 = vcmp.eq.f32.partialorder %v151, 8.507059e+37
      %v153 = vand.u32 %v140, 2147483648
      %v154 = vor.u32 1.1754944e-38, %v153
      %v155 = vsel %vm152, %v154, %v150
      %v156 = vmul.f32 %v138, %v155
      %v157 = vrcp.pop %v141
      %v158 = vmul.f32 %v141, %v157
      %v159 = vsub.f32 1.0, %v158
      %v160 = vmul.f32 %v157, %v159
      %v161 = vadd.f32 %v157, %v160
      %vm162 = vweird.f32 %v141
      %vm163 = vweird.f32 %v157
      %vm164 = vmor %vm162, %vm163
      %v165 = vsel %vm164, %v157, %v161
      %v166 = vand.u32 2147483647, %v141
      %vm167 = vcmp.eq.f32.partialorder %v166, 8.507059e+37
      %v168 = vand.u32 %v141, 2147483648
      %v169 = vor.u32 1.1754944e-38, %v168
      %v170 = vsel %vm167, %v169, %v165
      %v171 = vmul.f32 %v139, %v170
      %v172 = vsel %vm130, %v156, 0.0
      %v173 = vsel %vm131, %v171, 0.0
      %v174 = vld [vmem:[#allocation7] sm:$0xff]
      %v175 = vadd.f32 %v172, %v173
      %v176 = vadd.f32 %v174, %v175
      %177 = vst [vmem:[#allocation7] sm:$0xff] %v176
    $region29: #{tpu_custom_call.1} parent=1 // pred_fallthru
      _
    // Predicated region
    $region30: #{tpu_custom_call.1} parent=1 // pred_check
      _
    $region31: #{tpu_custom_call.1} parent=1 // pred_check_branch
      %179 = sbr.rel (0) target = $region33
    $region32: #{tpu_custom_call.1} parent=1 // pred_region
      %181 = vsyncadd [#allocation4], 0
      %s183 = sshll.u32 [#allocation7], 4
      %s184 = int_to_ptr.vmem [resolvable:$true] %s183
      %s185 = sshll.u32 %s2, 4
      %s186 = int_to_ptr.hbm [resolvable:$true] %s185
      %188 = dma.vmem_to_hbm [thread:$0]  %s184, 128, %s186, [#allocation4]
    $region33: #{tpu_custom_call.1} parent=1 // pred_fallthru
      _
    // Predicated region
    $region34: #{tpu_custom_call.1} parent=1 // pred_check
      _
    $region35: #{tpu_custom_call.1} parent=1 // pred_check_branch
      %190 = sbr.rel (0) target = $region37
    $region36: #{tpu_custom_call.1} parent=1 // pred_region
      %192 = dma.done [#allocation4], 128
    $region37: #{tpu_custom_call.1} parent=1 // pred_fallthru
      _
    %193 = vsyncpa [#allocation3], 1
    %194 = vsyncpa [#allocation6], 1
    %195 = vsyncpa [#allocation4], 1

</llo_original>
